<compile_context>
chip_gen: v7x
topology: tpu7x:2x2x1
jax: 0.10.0
libtpu: 0.0.40
codegen_flags: <defaults>
</compile_context>

<pallas_src>
import jax
import jax.numpy as jnp
from jax.experimental import pallas as pl
from jax.experimental.pallas import tpu as pltpu

_LANES = 128
_NT_DIM_NUMBERS = (((1,), (1,)), ((), ()))   # contract last dim of both (A @ B^T)


def _regression_kernel(x_ref, w_ref, b_ref, o_ref):
    """x_ref: (TB, D) VMEM; w_ref: (1, D) VMEM; b_ref: (1, 1) SMEM; o_ref: (1, 1, TB)."""
    # Lane-dense logits: (1, TB) = w (1, D) · x (TB, D)^T, contracting on D.
    # Same NT pattern the flash-attention q·k^T uses, so the big x tile is fed to
    # the MXU without materializing a transpose, and the result already has the
    # batch on the lane axis -> unmasked 128-lane stores + contiguous output DMA.
    logits = jax.lax.dot_general(
        w_ref[...], x_ref[...],
        dimension_numbers=_NT_DIM_NUMBERS,
        preferred_element_type=jnp.float32,
    )                                                   # (1, TB) f32
    logits = logits + b_ref[0, 0]                       # scalar bias from SMEM
    o_ref[...] = jax.nn.sigmoid(logits).astype(o_ref.dtype).reshape(o_ref.shape)


def _round_up(n: int, m: int) -> int:
    return ((n + m - 1) // m) * m


def regression_forward(x, weight, bias, *, block_batch=4096):
    """sigmoid(x @ weight.T + bias), matching Regression.forward(composed).

    x:      (B, D)
    weight: (1, D)   (torch Linear weight layout: (out=1, in=D))
    bias:   (1,)
    returns (B, 1) in x.dtype
    """
    B, D = x.shape
    assert weight.shape == (1, D)
    itemsize = jnp.dtype(x.dtype).itemsize

    # ---- tile-size selection -------------------------------------------------
    # HBM-bandwidth-bound (~2 flops / input element): big x tiles amortize the
    # fixed per-grid-step pipeline overhead.  Cap the per-buffer tile at 16 MiB so
    # the double-buffered input stays well inside v7x's 64 MiB physical VMEM.
    max_tile_bytes = 16 << 20
    tb_cap = max(8, (max_tile_bytes // (D * itemsize)) // 8 * 8)
    tb = min(block_batch, tb_cap, _round_up(B, 8))
    tb = max(8, (tb // 8) * 8)                           # multiple of 8 sublanes

    # v7x megacore: make sure >=2 grid steps when the batch allows it, so the
    # "parallel" grid axis can shard blocks across both TensorCores.
    min_tb = 512
    if pl.cdiv(B, tb) < 2 and B >= 2 * min_tb:
        tb = min(tb, max(min_tb, _round_up(pl.cdiv(B, 2), _LANES)))

    num_blocks = pl.cdiv(B, tb)
    bias2d = bias.reshape(1, 1)

    # ---- VMEM accounting (padded block footprints) ----------------------------
    out_lanes = _round_up(tb, _LANES)                    # lane padding of (1,1,tb)
    vmem_need = (2 * tb * D * itemsize                   # double-buffered x tile
                 + 2 * 8 * D * itemsize                  # (1, D) weight, 8-sublane pad
                 + 2 * 8 * out_lanes * itemsize)         # (1, 1, tb) output block
    vmem_limit = int(max(16 << 20, min(vmem_need + (4 << 20), 56 << 20)))

    out = pl.pallas_call(
        _regression_kernel,
        out_shape=jax.ShapeDtypeStruct((num_blocks, 1, tb), x.dtype),
        grid_spec=pltpu.PrefetchScalarGridSpec(
            num_scalar_prefetch=0,
            grid=(num_blocks,),
            in_specs=[
                pl.BlockSpec((tb, D), lambda i: (i, 0)),            # x tile (ragged last block clipped)
                pl.BlockSpec((1, D), lambda i: (0, 0)),             # weight row (shared)
                pl.BlockSpec(memory_space=pltpu.MemorySpace.SMEM),  # bias scalar
            ],
            out_specs=pl.BlockSpec((1, 1, tb), lambda i: (i, 0, 0)),
        ),
        compiler_params=pltpu.CompilerParams(
            dimension_semantics=("parallel",),
            vmem_limit_bytes=vmem_limit,
        ),
    )(x, weight, bias2d)

    # Lane-dense (num_blocks, 1, tb) -> (B, 1); padded tail rows (garbage from the
    # clipped last block) are dropped here.
    return out.reshape(num_blocks * tb)[:B].reshape(B, 1)


if __name__ == "__main__":
    key = jax.random.PRNGKey(0)
    kx, kw, kb = jax.random.split(key, 3)

    embed_dim = 512     # module default

    # Deterministic Linear(embed_dim, 1) params (PyTorch default init scale).
    bound = 1.0 / (embed_dim ** 0.5)
    weight = jax.random.uniform(kw, (1, embed_dim), minval=-bound, maxval=bound,
                                dtype=jnp.float32)
    bias = jax.random.uniform(kb, (1,), minval=-bound, maxval=bound, dtype=jnp.float32)

    def ref_fn(x):
        return jax.nn.sigmoid(x @ weight.T + bias)

    # 1) Single ragged block (batch not a multiple of 8).
    x1 = jax.random.normal(kx, (20, embed_dim), dtype=jnp.float32)
    o1 = jax.block_until_ready(regression_forward(x1, weight, bias))
    assert o1.shape == (20, 1)
    assert jnp.allclose(o1, ref_fn(x1), atol=1e-4, rtol=1e-4)

    # 2) Multi-block grid, exact tiling.
    x2 = jax.random.normal(jax.random.fold_in(kx, 1), (48, embed_dim), dtype=jnp.float32)
    o2 = jax.block_until_ready(regression_forward(x2, weight, bias, block_batch=16))
    assert o2.shape == (48, 1)
    assert jnp.allclose(o2, ref_fn(x2), atol=1e-4, rtol=1e-4)

    # 3) Multi-block grid with a ragged last block and lane-dense (128-wide) tiles.
    x3 = jax.random.normal(jax.random.fold_in(kx, 2), (300, embed_dim), dtype=jnp.float32)
    o3 = jax.block_until_ready(regression_forward(x3, weight, bias, block_batch=128))
    assert o3.shape == (300, 1)
    assert jnp.allclose(o3, ref_fn(x3), atol=1e-4, rtol=1e-4)

    print("KERNEL_OK")
</pallas_src>

<mosaic_0001>
module attributes {stable_mosaic.version = 11 : i64} {
  func.func @_regression_kernel(%arg0: i32, %arg1: memref<24x512xf32, #tpu.memory_space<vmem>>, %arg2: memref<1x512xf32, #tpu.memory_space<vmem>>, %arg3: memref<1x1xf32, #tpu.memory_space<smem>>, %arg4: memref<1x1x24xf32, #tpu.memory_space<vmem>>) attributes {dimension_semantics = [#tpu.dimension_semantics<parallel>], iteration_bounds = array<i64: 1>, scalar_prefetch = 0 : i64, scratch_operands = 0 : i64, tpu.core_type = #tpu.core_type<tc>, window_params = [{transform_indices = @transform_0, window_bounds = array<i64: 24, 512>}, {pipeline_mode = #tpu.pipeline_mode<synchronous>, transform_indices = @transform_1, window_bounds = array<i64: 1, 512>}, {transform_indices = @transform_2, window_bounds = array<i64: 1, 1>}, {transform_indices = @transform_3, window_bounds = array<i64: 1, 1, 24>}]} {
    %c0 = arith.constant 0 : index
    %c0_0 = arith.constant 0 : index
    %0 = vector.load %arg2[%c0, %c0_0] : memref<1x512xf32, #tpu.memory_space<vmem>>, vector<1x512xf32>
    %c0_1 = arith.constant 0 : index
    %c0_2 = arith.constant 0 : index
    %1 = vector.load %arg1[%c0_1, %c0_2] : memref<24x512xf32, #tpu.memory_space<vmem>>, vector<24x512xf32>
    %cst = arith.constant dense<0.000000e+00> : vector<1x24xf32>
    %2 = tpu.matmul %0, %1, %cst {dimension_numbers = #tpu.dot_dimension_numbers<[1], [1], [0], [0], [0, 0, 1, 0], [], []>} : vector<1x512xf32>, vector<24x512xf32>, vector<1x24xf32> -> vector<1x24xf32>
    %c0_3 = arith.constant 0 : index
    %c0_4 = arith.constant 0 : index
    %3 = memref.load %arg3[%c0_3, %c0_4] : memref<1x1xf32, #tpu.memory_space<smem>>
    %4 = vector.broadcast %3 : f32 to vector<1x24xf32>
    %5 = arith.addf %2, %4 : vector<1x24xf32>
    %6 = arith.negf %5 : vector<1x24xf32>
    %7 = math.exp %6 : vector<1x24xf32>
    %cst_5 = arith.constant 1.000000e+00 : f32
    %8 = vector.broadcast %cst_5 : f32 to vector<1x24xf32>
    %9 = arith.addf %8, %7 : vector<1x24xf32>
    %10 = arith.divf %8, %9 : vector<1x24xf32>
    %11 = vector.shape_cast %10 : vector<1x24xf32> to vector<1x1x24xf32>
    %c0_6 = arith.constant 0 : index
    %c0_7 = arith.constant 0 : index
    %c0_8 = arith.constant 0 : index
    %12 = vector.load %arg4[%c0_6, %c0_7, %c0_8] : memref<1x1x24xf32, #tpu.memory_space<vmem>>, vector<1x1x24xf32>
    tpu.vector_store %arg4[%c0_6, %c0_7, %c0_8], %11 {strides = array<i32>} : memref<1x1x24xf32, #tpu.memory_space<vmem>>, vector<1x1x24xf32>,
    return
  }
  func.func @transform_0(%arg0: i32) -> (i32, i32) {
    %c0_i32 = arith.constant 0 : i32
    %c0_i32_0 = arith.constant 0 : i32
    return %arg0, %c0_i32 : i32, i32
  }
  func.func @transform_1(%arg0: i32) -> (i32, i32) {
    %c0_i32 = arith.constant 0 : i32
    %c0_i32_0 = arith.constant 0 : i32
    %c0_i32_1 = arith.constant 0 : i32
    return %c0_i32, %c0_i32_0 : i32, i32
  }
  func.func @transform_2(%arg0: i32) -> (i32, i32) {
    %c0_i32 = arith.constant 0 : i32
    %c0_i32_0 = arith.constant 0 : i32
    %c0_i32_1 = arith.constant 0 : i32
    return %c0_i32, %c0_i32_0 : i32, i32
  }
  func.func @transform_3(%arg0: i32) -> (i32, i32, i32) {
    %c0_i32 = arith.constant 0 : i32
    %c0_i32_0 = arith.constant 0 : i32
    %c0_i32_1 = arith.constant 0 : i32
    return %arg0, %c0_i32, %c0_i32_0 : i32, i32, i32
  }
}

</mosaic_0001>

<llo_original>
// kernel: tpu_custom_call.1
$region0: #{tpu_custom_call.1}
  #allocation0 [shape = 'u32[]', space=smem, size = 0x4, offset = 0x4, fixed_abs, tag = 'smem constant byte address 0x4 - core index']
  #allocation1 [shape = 'u32[144,128]{1,0:T(1,128)}', space=vmem, size = 0x12000, scoped, tag = 'internal scratch']
  #allocation2 [shape = 'f32[1,1]{1,0:T(1,128)S(6)}', space=smem, size = 0x200, scoped, tag = 'scoped memory for tpu_custom_call.1']
  %s0 = inlined_call_operand.hbm [shape: f32[20,512], index: 0, kind: input, shape index: {}]
  %s1 = inlined_call_operand.vmem [shape: f32[1,512], index: 1, kind: input, shape index: {}]
  %s2 = inlined_call_operand.<no memory space> [shape: f32[1,1], index: 2, kind: input, shape index: {}]
  %s3 = inlined_call_operand.hbm [shape: f32[1,1,24], index: 3, kind: output, shape index: {}]
  %s4 = sld [smem:[#allocation0]]
  $region26: #{tpu_custom_call.1} parent=0
    _
  %s6 = ssub.s32 1, %s4
  %s7 = scalar_select 0, %s6, %s4
  %8 = sst [smem:[#allocation2]] %s2
  $region1: #{tpu_custom_call.1} parent=0
    #allocation3 [shape = 'u8[49152]{0}', space=vmem, size = 0xc000, scoped, tag = 'input window, operand 0, single buffered']
    #allocation4 [shape = 's32[1]{0}', space=sflag, size = 0x4, scoped, tag = 'scoped memory for tpu_custom_call.1']
    #allocation5 [shape = 's32[1]{0}', space=sflag, size = 0x4, scoped, tag = 'scoped memory for tpu_custom_call.1']
    #allocation6 [shape = 'u8[512]{0}', space=vmem, size = 0x400, scoped, tag = 'output window, operand 0, single buffered']
    %9 = vsyncpa [#allocation4], 0
    %10 = vsyncpa [#allocation5], 0
    // Predicated region
    $region2: #{tpu_custom_call.1} parent=1 // pred_check
      _
    $region3: #{tpu_custom_call.1} parent=1 // pred_check_branch
      %12 = sbr.rel (0) target = $region5
    $region4: #{tpu_custom_call.1} parent=1 // pred_region
      %s14 = ssub.s32 1536, 1536
      %15 = vsyncadd [#allocation4], %s14
      %s16 = sshll.u32 [#allocation3], 4
      %s17 = int_to_ptr.vmem [resolvable:$true] %s16
      %22 = dma.hbm_to_vmem [thread:$0]  %s0, 1536, %s17, [#allocation4], 512, 512, 32
    $region5: #{tpu_custom_call.1} parent=1 // pred_fallthru
      _
    // Predicated region
    $region6: #{tpu_custom_call.1} parent=1 // pred_check
      _
    $region7: #{tpu_custom_call.1} parent=1 // pred_check_branch
      %24 = sbr.rel (0) target = $region9
    $region8: #{tpu_custom_call.1} parent=1 // pred_region
      _
    $region9: #{tpu_custom_call.1} parent=1 // pred_fallthru
      _
    // Predicated region
    $region10: #{tpu_custom_call.1} parent=1 // pred_check
      _
    $region11: #{tpu_custom_call.1} parent=1 // pred_check_branch
      %26 = sbr.rel (0) target = $region13
    $region12: #{tpu_custom_call.1} parent=1 // pred_region
      _
    $region13: #{tpu_custom_call.1} parent=1 // pred_fallthru
      _
    // Predicated region
    $region14: #{tpu_custom_call.1} parent=1 // pred_check
      _
    $region15: #{tpu_custom_call.1} parent=1 // pred_check_branch
      %28 = sbr.rel (0) target = $region17
    $region16: #{tpu_custom_call.1} parent=1 // pred_region
      %29 = dma.done [#allocation4], 1536
    $region17: #{tpu_custom_call.1} parent=1 // pred_fallthru
      _
    %v30 = vld [vmem:[%s1] sm:$0xf]
    %v31 = vld [vmem:[#allocation3] sm:$0xff]
    %v32 = vld [vmem:[#allocation3 + $0x8] sm:$0xff]
    %v33 = vld [vmem:[#allocation3 + $0x10] sm:$0xff]
    %v34 = vld [vmem:[#allocation3 + $0x18] sm:$0xff]
    %v35 = vld [vmem:[#allocation3 + $0x20] sm:$0xff]
    %v36 = vld [vmem:[#allocation3 + $0x28] sm:$0xff]
    %v37 = vld [vmem:[#allocation3 + $0x30] sm:$0xff]
    %v38 = vld [vmem:[#allocation3 + $0x38] sm:$0xff]
    %v39 = vld [vmem:[#allocation3 + $0x40] sm:$0xff]
    %v40 = vld [vmem:[#allocation3 + $0x48] sm:$0xff]
    %v41 = vld [vmem:[#allocation3 + $0x50] sm:$0xff]
    %v42 = vld [vmem:[#allocation3 + $0x58] sm:$0xff]
    %s43 = sld [smem:[#allocation2]]
    %v44 = vstv %s43
    %v46 = vlaneseq
    %v47 = vshrl.u32 %v46, 7
    %v48 = vsub.s32 0, %v47
    %v49 = vrot.slane %v30, %v48
    %v50 = vlaneseq
    %v51 = vshrl.u32 %v50, 7
    %v52 = vsub.s32 1, %v51
    %v53 = vrot.slane %v30, %v52
    %v54 = vlaneseq
    %v55 = vshrl.u32 %v54, 7
    %v56 = vsub.s32 2, %v55
    %v57 = vrot.slane %v30, %v56
    %v58 = vlaneseq
    %v59 = vshrl.u32 %v58, 7
    %v60 = vsub.s32 3, %v59
    %v61 = vrot.slane %v30, %v60
    %66 = vmatprep.subr.mxu0 %v32
    %67 = vmatpush1.xpose.msra.mxu0 %v31
    %68 = vmatprep.subr.mxu0 %v36
    %69 = vmatpush1.xpose.msra.mxu0 %v35
    %70 = vmatprep.subr.mxu0 %v40
    %71 = vmatpush1.xpose.msra.mxu0 %v39
    %72 = vmatprep.subr.mxu0 0.0
    %73 = vmatpush1.xpose.msra.mxu0 0.0
    %74 = vmatprep.subr.mxu0 0.0
    %75 = vmatpush1.xpose.msra.mxu0 0.0
    %76 = vmatprep.subr.mxu0 0.0
    %77 = vmatpush1.xpose.msra.mxu0 0.0
    %78 = vmatprep.subr.mxu0 0.0
    %79 = vmatpush1.xpose.msra.mxu0 0.0
    %80 = vmatprep.subr.mxu0 0.0
    %81 = vmatpush1.xpose.msra.mxu0 0.0
    %82 = vmatprep.subr.mxu0 0.0
    %83 = vmatpush1.xpose.msra.mxu0 0.0
    %84 = vmatprep.subr.mxu0 0.0
    %85 = vmatpush1.xpose.msra.mxu0 0.0
    %86 = vmatprep.subr.mxu0 0.0
    %87 = vmatpush1.xpose.msra.mxu0 0.0
    %88 = vmatprep.subr.mxu0 0.0
    %89 = vmatpush1.xpose.msra.mxu0 0.0
    %90 = vmatprep.subr.mxu0 0.0
    %91 = vmatpush1.xpose.msra.mxu0 0.0
    %92 = vmatprep.subr.mxu0 0.0
    %93 = vmatpush1.xpose.msra.mxu0 0.0
    %94 = vmatprep.subr.mxu0 0.0
    %95 = vmatpush1.xpose.msra.mxu0 0.0
    %96 = vmatprep.subr.mxu0 0.0
    %97 = vmatpush1.xpose.msra.mxu0 0.0
    %98 = vmatprep.subr.mxu0 0.0
    %99 = vmatpush1.xpose.msra.mxu0 0.0
    %100 = vmatprep.subr.mxu0 0.0
    %101 = vmatpush1.xpose.msra.mxu0 0.0
    %102 = vmatprep.subr.mxu0 0.0
    %103 = vmatpush1.xpose.msra.mxu0 0.0
    %104 = vmatprep.subr.mxu0 0.0
    %105 = vmatpush1.xpose.msra.mxu0 0.0
    %106 = vmatprep.subr.mxu0 0.0
    %107 = vmatpush1.xpose.msra.mxu0 0.0
    %108 = vmatprep.subr.mxu0 0.0
    %109 = vmatpush1.xpose.msra.mxu0 0.0
    %110 = vmatprep.subr.mxu0 0.0
    %111 = vmatpush1.xpose.msra.mxu0 0.0
    %112 = vmatprep.subr.mxu0 0.0
    %113 = vmatpush1.xpose.msra.mxu0 0.0
    %114 = vmatprep.subr.mxu0 0.0
    %115 = vmatpush1.xpose.msra.mxu0 0.0
    %116 = vmatprep.subr.mxu0 0.0
    %117 = vmatpush1.xpose.msra.mxu0 0.0
    %118 = vmatprep.subr.mxu0 0.0
    %119 = vmatpush1.xpose.msra.mxu0 0.0
    %120 = vmatprep.subr.mxu0 0.0
    %121 = vmatpush1.xpose.msra.mxu0 0.0
    %122 = vmatprep.subr.mxu0 0.0
    %123 = vmatpush1.xpose.msra.mxu0 0.0
    %124 = vmatprep.subr.mxu0 0.0
    %125 = vmatpush1.xpose.msra.mxu0 0.0
    %126 = vmatprep.subr.mxu0 0.0
    %127 = vmatpush1.xpose.msra.mxu0 0.0
    %128 = vmatprep.subr.mxu0 0.0
    %129 = vmatpush1.xpose.msra.mxu0 0.0
    %130 = vmatprep.mubr.f32.mxu0 %v53
    %131 = vmatmul.mubr.f32.gmra.mrb[0].mxu0 %v49
    %v132 = vpop.f32.mrb[0].mxu0
    %v133 = vadd.f32 %v44, %v132
    %v134 = vpop.f32.mrb[0].mxu0
    %135 = vdwg.mxu0
    %136 = vmatprep.subr.mxu0 %v34
    %137 = vmatpush1.xpose.msra.mxu0 %v33
    %138 = vmatprep.subr.mxu0 %v38
    %139 = vmatpush1.xpose.msra.mxu0 %v37
    %140 = vmatprep.subr.mxu0 %v42
    %141 = vmatpush1.xpose.msra.mxu0 %v41
    %142 = vmatprep.subr.mxu0 0.0
    %143 = vmatpush1.xpose.msra.mxu0 0.0
    %144 = vmatprep.subr.mxu0 0.0
    %145 = vmatpush1.xpose.msra.mxu0 0.0
    %146 = vmatprep.subr.mxu0 0.0
    %147 = vmatpush1.xpose.msra.mxu0 0.0
    %148 = vmatprep.subr.mxu0 0.0
    %149 = vmatpush1.xpose.msra.mxu0 0.0
    %150 = vmatprep.subr.mxu0 0.0
    %151 = vmatpush1.xpose.msra.mxu0 0.0
    %152 = vmatprep.subr.mxu0 0.0
    %153 = vmatpush1.xpose.msra.mxu0 0.0
    %154 = vmatprep.subr.mxu0 0.0
    %155 = vmatpush1.xpose.msra.mxu0 0.0
    %156 = vmatprep.subr.mxu0 0.0
    %157 = vmatpush1.xpose.msra.mxu0 0.0
    %158 = vmatprep.subr.mxu0 0.0
    %159 = vmatpush1.xpose.msra.mxu0 0.0
    %160 = vmatprep.subr.mxu0 0.0
    %161 = vmatpush1.xpose.msra.mxu0 0.0
    %162 = vmatprep.subr.mxu0 0.0
    %163 = vmatpush1.xpose.msra.mxu0 0.0
    %164 = vmatprep.subr.mxu0 0.0
    %165 = vmatpush1.xpose.msra.mxu0 0.0
    %166 = vmatprep.subr.mxu0 0.0
    %167 = vmatpush1.xpose.msra.mxu0 0.0
    %168 = vmatprep.subr.mxu0 0.0
    %169 = vmatpush1.xpose.msra.mxu0 0.0
    %170 = vmatprep.subr.mxu0 0.0
    %171 = vmatpush1.xpose.msra.mxu0 0.0
    %172 = vmatprep.subr.mxu0 0.0
    %173 = vmatpush1.xpose.msra.mxu0 0.0
    %174 = vmatprep.subr.mxu0 0.0
    %175 = vmatpush1.xpose.msra.mxu0 0.0
    %176 = vmatprep.subr.mxu0 0.0
    %177 = vmatpush1.xpose.msra.mxu0 0.0
    %178 = vmatprep.subr.mxu0 0.0
    %179 = vmatpush1.xpose.msra.mxu0 0.0
    %180 = vmatprep.subr.mxu0 0.0
    %181 = vmatpush1.xpose.msra.mxu0 0.0
    %182 = vmatprep.subr.mxu0 0.0
    %183 = vmatpush1.xpose.msra.mxu0 0.0
    %184 = vmatprep.subr.mxu0 0.0
    %185 = vmatpush1.xpose.msra.mxu0 0.0
    %186 = vmatprep.subr.mxu0 0.0
    %187 = vmatpush1.xpose.msra.mxu0 0.0
    %188 = vmatprep.subr.mxu0 0.0
    %189 = vmatpush1.xpose.msra.mxu0 0.0
    %190 = vmatprep.subr.mxu0 0.0
    %191 = vmatpush1.xpose.msra.mxu0 0.0
    %192 = vmatprep.subr.mxu0 0.0
    %193 = vmatpush1.xpose.msra.mxu0 0.0
    %194 = vmatprep.subr.mxu0 0.0
    %195 = vmatpush1.xpose.msra.mxu0 0.0
    %196 = vmatprep.subr.mxu0 0.0
    %197 = vmatpush1.xpose.msra.mxu0 0.0
    %198 = vmatprep.subr.mxu0 0.0
    %199 = vmatpush1.xpose.msra.mxu0 0.0
    %200 = vmatprep.mubr.f32.mxu0 %v61
    %201 = vmatmul.mubr.f32.gmra.mrb[0].mxu0 %v57
    %v202 = vpop.f32.mrb[0].mxu0
    %v203 = vadd.f32 %v133, %v202
    %v204 = vpop.f32.mrb[0].mxu0
    %205 = vdwg.mxu0
    %v206 = vxor.u32 %v203, 2147483648
    %v207 = vmul.f32 %v206, 1.442695
    %v208 = vpow.pop %v207
    %v209 = vadd.f32 %v208, 1.0
    %v210 = vrcp.pop %v209
    %v211 = vmul.f32 1.0, %v210
    %vm212 = vcmask 188416
    %213 = vst.msk [vmem:[#allocation6] sm:$0x1] %vm212, %v211
    // Predicated region
    $region18: #{tpu_custom_call.1} parent=1 // pred_check
      _
    $region19: #{tpu_custom_call.1} parent=1 // pred_check_branch
      %215 = sbr.rel (0) target = $region21
    $region20: #{tpu_custom_call.1} parent=1 // pred_region
      %s217 = ssub.s32 16, 16
      %218 = vsyncadd [#allocation5], %s217
      %s220 = sshll.u32 [#allocation6], 4
      %s221 = int_to_ptr.vmem [resolvable:$true] %s220
      %223 = dma.vmem_to_hbm [thread:$0]  %s221, 16, %s3, [#allocation5]
    $region21: #{tpu_custom_call.1} parent=1 // pred_fallthru
      _
    // Predicated region
    $region22: #{tpu_custom_call.1} parent=1 // pred_check
      _
    $region23: #{tpu_custom_call.1} parent=1 // pred_check_branch
      %225 = sbr.rel (0) target = $region25
    $region24: #{tpu_custom_call.1} parent=1 // pred_region
      %226 = dma.done [#allocation5], 16
    $region25: #{tpu_custom_call.1} parent=1 // pred_fallthru
      _
    %227 = vsyncpa [#allocation4], 1
    %228 = vsyncpa [#allocation5], 1

</llo_original>
